<compile_context>
chip_gen: v7x
topology: tpu7x:2x2x1
jax: 0.10.0
libtpu: 0.0.40
codegen_flags: <defaults>
</compile_context>

<pallas_src>
import functools

import jax
import jax.numpy as jnp
from jax.experimental import pallas as pl
from jax.experimental.pallas import tpu as pltpu


def _conv_frn_tlu_kernel(x_ref, w_ref, g_ref, b_ref, gw_ref, gb_ref, tau_ref,
                         eps_ref, o_ref, *, Ho):
    """One batch element per grid step.

    x_ref:   (1, H+2, (W+2)*Cin)  bf16  zero-padded input, (W,Cin) on lanes
    w_ref:   (3, (W+2)*Cin, W*Cout) bf16  lowered (banded) conv weight
    g_ref:   (W*Cout, W*Cout)     f32   per-channel group-mean matrix (1/(H*W))
    b_ref:   (1, W*Cout)          f32   conv bias, tiled over W
    gw_ref:  (1, W*Cout)          f32   FRN weight, tiled over W
    gb_ref:  (1, W*Cout)          f32   FRN bias, tiled over W
    tau_ref: (1, W*Cout)          f32   TLU tau, tiled over W
    eps_ref: (1,)                 f32   FRN eps (SMEM scalar)
    o_ref:   (1, H, W*Cout)
    """
    woc = o_ref.shape[-1]
    x = x_ref[0]                                   # (H+2, (W+2)*Cin) bf16

    # 3x3 conv as 3 banded matmuls (one per kernel row), f32 accumulation.
    acc = jnp.zeros((Ho, woc), jnp.float32)
    for kh in range(3):
        acc = acc + jnp.dot(x[kh:kh + Ho, :], w_ref[kh],
                            preferred_element_type=jnp.float32)
    acc = acc + b_ref[...]                         # bias (broadcast over rows)

    # FRNorm2D: nu2 = mean over spatial dims per channel, kept lane-dense.
    ss = jnp.sum(acc * acc, axis=0, keepdims=True)            # (1, W*Cout)
    nu2 = jnp.dot(ss, g_ref[...],                              # group mean,
                  preferred_element_type=jnp.float32)          # re-broadcast
    y = acc * jax.lax.rsqrt(nu2 + jnp.abs(eps_ref[0]))
    y = gw_ref[...] * y + gb_ref[...]

    # TLU: max(x, tau)
    y = jnp.maximum(y, tau_ref[...])

    o_ref[0] = y.astype(o_ref.dtype)


def conv_block(x, w, b, frn_w, frn_b, eps, tau):
    """x: (N, Cin, H, W) NCHW; w: (Cout, Cin, 3, 3) PyTorch OIHW.

    Returns (N, Cout, H, W).
    """
    N, Cin, H, W = x.shape
    Cout = w.shape[0]
    Hp, Wp = H + 2, W + 2
    woc = W * Cout

    # --- wrapper glue: NCHW -> padded band layout (lane dim = (W+2)*Cin) ---
    x_nhwc = jnp.transpose(x, (0, 2, 3, 1))
    x_pad = jnp.pad(x_nhwc, ((0, 0), (1, 1), (1, 1), (0, 0)))
    x_band = x_pad.reshape(N, Hp, Wp * Cin).astype(jnp.bfloat16)

    # Lowered banded weight:
    #   w_low[kh, wi*Cin+ci, wo*Cout+co] = w[co, ci, kh, wi-wo] if 0<=wi-wo<=2
    w_k = jnp.transpose(w, (2, 3, 1, 0))                       # (3,3,Cin,Cout)
    sel = (jnp.arange(Wp)[None, :, None]
           == (jnp.arange(W)[None, None, :]
               + jnp.arange(3)[:, None, None])).astype(jnp.float32)  # (3,Wp,W)
    w_low = jnp.einsum('akio,kpq->apiqo', w_k, sel)            # (3,Wp,Cin,W,Cout)
    w_low = w_low.reshape(3, Wp * Cin, woc).astype(jnp.bfloat16)

    # Group-mean matrix for FRN (sums W positions of the same channel and
    # broadcasts the spatial mean back across all lanes). Folds 1/(H*W).
    ch = jnp.arange(woc) % Cout
    g_mat = (ch[:, None] == ch[None, :]).astype(jnp.float32) / float(H * W)

    # Per-channel params tiled onto the (W, Cout) lane layout (hoisted here).
    b_l = jnp.tile(b.astype(jnp.float32), W).reshape(1, woc)
    gw_l = jnp.tile(frn_w.astype(jnp.float32), W).reshape(1, woc)
    gb_l = jnp.tile(frn_b.astype(jnp.float32), W).reshape(1, woc)
    tau_l = jnp.tile(tau.astype(jnp.float32), W).reshape(1, woc)
    eps_s = eps.reshape(1).astype(jnp.float32)

    out_band = pl.pallas_call(
        functools.partial(_conv_frn_tlu_kernel, Ho=H),
        out_shape=jax.ShapeDtypeStruct((N, H, woc), x.dtype),
        grid=(N,),
        in_specs=[
            pl.BlockSpec((1, Hp, Wp * Cin), lambda n: (n, 0, 0)),
            pl.BlockSpec((3, Wp * Cin, woc), lambda n: (0, 0, 0)),
            pl.BlockSpec((woc, woc), lambda n: (0, 0)),
            pl.BlockSpec((1, woc), lambda n: (0, 0)),
            pl.BlockSpec((1, woc), lambda n: (0, 0)),
            pl.BlockSpec((1, woc), lambda n: (0, 0)),
            pl.BlockSpec((1, woc), lambda n: (0, 0)),
            pl.BlockSpec(memory_space=pltpu.MemorySpace.SMEM),
        ],
        out_specs=pl.BlockSpec((1, H, woc), lambda n: (n, 0, 0)),
        compiler_params=pltpu.CompilerParams(
            dimension_semantics=("parallel",)),
    )(x_band, w_low, g_mat, b_l, gw_l, gb_l, tau_l, eps_s)

    # Band layout -> NCHW (kept only because the module contract is NCHW).
    return jnp.transpose(out_band.reshape(N, H, W, Cout), (0, 3, 1, 2))


def conv_block_reference(x, w, b, frn_w, frn_b, eps, tau):
    """Pure-JAX f32 reference matching the PyTorch module semantics (NCHW)."""
    Cout = w.shape[0]
    y = jax.lax.conv_general_dilated(
        x, w, window_strides=(1, 1), padding=[(1, 1), (1, 1)],
        dimension_numbers=('NCHW', 'OIHW', 'NCHW'))
    y = y + b.reshape(1, Cout, 1, 1)
    nu2 = jnp.mean(y * y, axis=(2, 3), keepdims=True)
    y = y * jax.lax.rsqrt(nu2 + jnp.abs(eps))
    y = frn_w.reshape(1, Cout, 1, 1) * y + frn_b.reshape(1, Cout, 1, 1)
    return jnp.maximum(y, tau.reshape(1, Cout, 1, 1))


if __name__ == "__main__":
    N, Cin, Cout, H, W = 2, 4, 8, 16, 16

    key = jax.random.PRNGKey(0)
    kx, kw, kb = jax.random.split(key, 3)

    x = jax.random.normal(kx, (N, Cin, H, W), jnp.float32)

    # Conv2d params (deterministic synthetic init), PyTorch OIHW layout.
    w = jax.random.normal(kw, (Cout, Cin, 3, 3), jnp.float32) * 0.1
    b = jax.random.normal(kb, (Cout,), jnp.float32) * 0.1
    # FRNorm2D params (matching nn.init in __init__)
    frn_w = jnp.ones((Cout,), jnp.float32)
    frn_b = jnp.zeros((Cout,), jnp.float32)
    eps = jnp.full((1,), 1e-6, jnp.float32)
    # TLU param
    tau = jnp.zeros((Cout,), jnp.float32)

    out = jax.block_until_ready(conv_block(x, w, b, frn_w, frn_b, eps, tau))
    ref = jax.block_until_ready(
        conv_block_reference(x, w, b, frn_w, frn_b, eps, tau))

    assert out.shape == (N, Cout, H, W), out.shape
    # bf16 MXU operands (f32 accumulation) -> slightly loosened tolerance.
    assert jnp.allclose(out, ref, atol=3e-2, rtol=3e-2), (
        float(jnp.max(jnp.abs(out - ref))))

    print("KERNEL_OK")
</pallas_src>

<mosaic_0001>
module attributes {stable_mosaic.version = 11 : i64} {
  func.func @_conv_frn_tlu_kernel(%arg0: i32, %arg1: memref<1x18x72xbf16, #tpu.memory_space<vmem>>, %arg2: memref<3x72x128xbf16, #tpu.memory_space<vmem>>, %arg3: memref<128x128xf32, #tpu.memory_space<vmem>>, %arg4: memref<1x128xf32, #tpu.memory_space<vmem>>, %arg5: memref<1x128xf32, #tpu.memory_space<vmem>>, %arg6: memref<1x128xf32, #tpu.memory_space<vmem>>, %arg7: memref<1x128xf32, #tpu.memory_space<vmem>>, %arg8: memref<1xf32, #tpu.memory_space<smem>>, %arg9: memref<1x16x128xf32, #tpu.memory_space<vmem>>) attributes {dimension_semantics = [#tpu.dimension_semantics<parallel>], iteration_bounds = array<i64: 2>, scalar_prefetch = 0 : i64, scratch_operands = 0 : i64, tpu.core_type = #tpu.core_type<tc>, window_params = [{transform_indices = @transform_0, window_bounds = array<i64: 1, 18, 72>}, {pipeline_mode = #tpu.pipeline_mode<synchronous>, transform_indices = @transform_1, window_bounds = array<i64: 3, 72, 128>}, {pipeline_mode = #tpu.pipeline_mode<synchronous>, transform_indices = @transform_2, window_bounds = array<i64: 128, 128>}, {pipeline_mode = #tpu.pipeline_mode<synchronous>, transform_indices = @transform_3, window_bounds = array<i64: 1, 128>}, {pipeline_mode = #tpu.pipeline_mode<synchronous>, transform_indices = @transform_4, window_bounds = array<i64: 1, 128>}, {pipeline_mode = #tpu.pipeline_mode<synchronous>, transform_indices = @transform_5, window_bounds = array<i64: 1, 128>}, {pipeline_mode = #tpu.pipeline_mode<synchronous>, transform_indices = @transform_6, window_bounds = array<i64: 1, 128>}, {transform_indices = @transform_7, window_bounds = array<i64: 1>}, {transform_indices = @transform_8, window_bounds = array<i64: 1, 16, 128>}]} {
    %c0 = arith.constant 0 : index
    %c0_0 = arith.constant 0 : index
    %c0_1 = arith.constant 0 : index
    %0 = vector.load %arg1[%c0, %c0_0, %c0_1] : memref<1x18x72xbf16, #tpu.memory_space<vmem>>, vector<1x18x72xbf16>
    %1 = vector.shape_cast %0 : vector<1x18x72xbf16> to vector<18x72xbf16>
    %cst = arith.constant 0.000000e+00 : f32
    %2 = vector.broadcast %cst : f32 to vector<16x128xf32>
    %3 = vector.extract_strided_slice %1 {offsets = [0, 0], sizes = [16, 72], strides = [1, 1]} : vector<18x72xbf16> to vector<16x72xbf16>
    %c0_2 = arith.constant 0 : index
    %c0_3 = arith.constant 0 : index
    %c0_4 = arith.constant 0 : index
    %4 = vector.load %arg2[%c0_2, %c0_3, %c0_4] : memref<3x72x128xbf16, #tpu.memory_space<vmem>>, vector<1x72x128xbf16>
    %5 = vector.shape_cast %4 : vector<1x72x128xbf16> to vector<72x128xbf16>
    %cst_5 = arith.constant dense<0.000000e+00> : vector<16x128xf32>
    %6 = tpu.matmul %3, %5, %cst_5 {dimension_numbers = #tpu.dot_dimension_numbers<[1], [0], [0], [1], [0, 0, 1, 1], [], []>} : vector<16x72xbf16>, vector<72x128xbf16>, vector<16x128xf32> -> vector<16x128xf32>
    %7 = arith.addf %2, %6 : vector<16x128xf32>
    %8 = vector.extract_strided_slice %1 {offsets = [1, 0], sizes = [16, 72], strides = [1, 1]} : vector<18x72xbf16> to vector<16x72xbf16>
    %c1 = arith.constant 1 : index
    %c0_6 = arith.constant 0 : index
    %c0_7 = arith.constant 0 : index
    %9 = vector.load %arg2[%c1, %c0_6, %c0_7] : memref<3x72x128xbf16, #tpu.memory_space<vmem>>, vector<1x72x128xbf16>
    %10 = vector.shape_cast %9 : vector<1x72x128xbf16> to vector<72x128xbf16>
    %cst_8 = arith.constant dense<0.000000e+00> : vector<16x128xf32>
    %11 = tpu.matmul %8, %10, %cst_8 {dimension_numbers = #tpu.dot_dimension_numbers<[1], [0], [0], [1], [0, 0, 1, 1], [], []>} : vector<16x72xbf16>, vector<72x128xbf16>, vector<16x128xf32> -> vector<16x128xf32>
    %12 = arith.addf %7, %11 : vector<16x128xf32>
    %13 = vector.extract_strided_slice %1 {offsets = [2, 0], sizes = [16, 72], strides = [1, 1]} : vector<18x72xbf16> to vector<16x72xbf16>
    %c2 = arith.constant 2 : index
    %c0_9 = arith.constant 0 : index
    %c0_10 = arith.constant 0 : index
    %14 = vector.load %arg2[%c2, %c0_9, %c0_10] : memref<3x72x128xbf16, #tpu.memory_space<vmem>>, vector<1x72x128xbf16>
    %15 = vector.shape_cast %14 : vector<1x72x128xbf16> to vector<72x128xbf16>
    %cst_11 = arith.constant dense<0.000000e+00> : vector<16x128xf32>
    %16 = tpu.matmul %13, %15, %cst_11 {dimension_numbers = #tpu.dot_dimension_numbers<[1], [0], [0], [1], [0, 0, 1, 1], [], []>} : vector<16x72xbf16>, vector<72x128xbf16>, vector<16x128xf32> -> vector<16x128xf32>
    %17 = arith.addf %12, %16 : vector<16x128xf32>
    %c0_12 = arith.constant 0 : index
    %c0_13 = arith.constant 0 : index
    %18 = vector.load %arg4[%c0_12, %c0_13] : memref<1x128xf32, #tpu.memory_space<vmem>>, vector<1x128xf32>
    %19 = vector.broadcast %18 : vector<1x128xf32> to vector<16x128xf32>
    %20 = arith.addf %17, %19 : vector<16x128xf32>
    %21 = arith.mulf %20, %20 : vector<16x128xf32>
    %cst_14 = arith.constant dense<0.000000e+00> : vector<128xf32>
    %22 = vector.multi_reduction <add>, %21, %cst_14 [0] : vector<16x128xf32> to vector<128xf32>
    %23 = vector.shape_cast %22 : vector<128xf32> to vector<1x128xf32>
    %c0_15 = arith.constant 0 : index
    %c0_16 = arith.constant 0 : index
    %24 = vector.load %arg3[%c0_15, %c0_16] : memref<128x128xf32, #tpu.memory_space<vmem>>, vector<128x128xf32>
    %cst_17 = arith.constant dense<0.000000e+00> : vector<1x128xf32>
    %25 = tpu.matmul %23, %24, %cst_17 {dimension_numbers = #tpu.dot_dimension_numbers<[1], [0], [0], [1], [0, 0, 1, 1], [], []>} : vector<1x128xf32>, vector<128x128xf32>, vector<1x128xf32> -> vector<1x128xf32>
    %c0_18 = arith.constant 0 : index
    %26 = memref.load %arg8[%c0_18] : memref<1xf32, #tpu.memory_space<smem>>
    %27 = math.absf %26 : f32
    %28 = vector.broadcast %27 : f32 to vector<1x128xf32>
    %29 = arith.addf %25, %28 : vector<1x128xf32>
    %30 = math.rsqrt %29 : vector<1x128xf32>
    %31 = vector.broadcast %30 : vector<1x128xf32> to vector<16x128xf32>
    %32 = arith.mulf %20, %31 : vector<16x128xf32>
    %c0_19 = arith.constant 0 : index
    %c0_20 = arith.constant 0 : index
    %33 = vector.load %arg5[%c0_19, %c0_20] : memref<1x128xf32, #tpu.memory_space<vmem>>, vector<1x128xf32>
    %34 = vector.broadcast %33 : vector<1x128xf32> to vector<16x128xf32>
    %35 = arith.mulf %34, %32 : vector<16x128xf32>
    %c0_21 = arith.constant 0 : index
    %c0_22 = arith.constant 0 : index
    %36 = vector.load %arg6[%c0_21, %c0_22] : memref<1x128xf32, #tpu.memory_space<vmem>>, vector<1x128xf32>
    %37 = vector.broadcast %36 : vector<1x128xf32> to vector<16x128xf32>
    %38 = arith.addf %35, %37 : vector<16x128xf32>
    %c0_23 = arith.constant 0 : index
    %c0_24 = arith.constant 0 : index
    %39 = vector.load %arg7[%c0_23, %c0_24] : memref<1x128xf32, #tpu.memory_space<vmem>>, vector<1x128xf32>
    %40 = vector.broadcast %39 : vector<1x128xf32> to vector<16x128xf32>
    %41 = arith.maximumf %38, %40 : vector<16x128xf32>
    %c0_25 = arith.constant 0 : index
    %c0_26 = arith.constant 0 : index
    %c0_27 = arith.constant 0 : index
    %42 = vector.load %arg9[%c0_25, %c0_26, %c0_27] : memref<1x16x128xf32, #tpu.memory_space<vmem>>, vector<1x16x128xf32>
    %43 = vector.shape_cast %42 : vector<1x16x128xf32> to vector<16x128xf32>
    %44 = vector.shape_cast %41 : vector<16x128xf32> to vector<1x16x128xf32>
    tpu.vector_store %arg9[%c0_25, %c0_26, %c0_27], %44 {strides = array<i32>} : memref<1x16x128xf32, #tpu.memory_space<vmem>>, vector<1x16x128xf32>,
    return
  }
  func.func @transform_0(%arg0: i32) -> (i32, i32, i32) {
    %c0_i32 = arith.constant 0 : i32
    %c0_i32_0 = arith.constant 0 : i32
    %c0_i32_1 = arith.constant 0 : i32
    return %arg0, %c0_i32, %c0_i32_0 : i32, i32, i32
  }
  func.func @transform_1(%arg0: i32) -> (i32, i32, i32) {
    %c0_i32 = arith.constant 0 : i32
    %c0_i32_0 = arith.constant 0 : i32
    %c0_i32_1 = arith.constant 0 : i32
    %c0_i32_2 = arith.constant 0 : i32
    return %c0_i32, %c0_i32_0, %c0_i32_1 : i32, i32, i32
  }
  func.func @transform_2(%arg0: i32) -> (i32, i32) {
    %c0_i32 = arith.constant 0 : i32
    %c0_i32_0 = arith.constant 0 : i32
    %c0_i32_1 = arith.constant 0 : i32
    return %c0_i32, %c0_i32_0 : i32, i32
  }
  func.func @transform_3(%arg0: i32) -> (i32, i32) {
    %c0_i32 = arith.constant 0 : i32
    %c0_i32_0 = arith.constant 0 : i32
    %c0_i32_1 = arith.constant 0 : i32
    return %c0_i32, %c0_i32_0 : i32, i32
  }
  func.func @transform_4(%arg0: i32) -> (i32, i32) {
    %c0_i32 = arith.constant 0 : i32
    %c0_i32_0 = arith.constant 0 : i32
    %c0_i32_1 = arith.constant 0 : i32
    return %c0_i32, %c0_i32_0 : i32, i32
  }
  func.func @transform_5(%arg0: i32) -> (i32, i32) {
    %c0_i32 = arith.constant 0 : i32
    %c0_i32_0 = arith.constant 0 : i32
    %c0_i32_1 = arith.constant 0 : i32
    return %c0_i32, %c0_i32_0 : i32, i32
  }
  func.func @transform_6(%arg0: i32) -> (i32, i32) {
    %c0_i32 = arith.constant 0 : i32
    %c0_i32_0 = arith.constant 0 : i32
    %c0_i32_1 = arith.constant 0 : i32
    return %c0_i32, %c0_i32_0 : i32, i32
  }
  func.func @transform_7(%arg0: i32) -> i32 {
    %c0_i32 = arith.constant 0 : i32
    %c0_i32_0 = arith.constant 0 : i32
    return %c0_i32 : i32
  }
  func.func @transform_8(%arg0: i32) -> (i32, i32, i32) {
    %c0_i32 = arith.constant 0 : i32
    %c0_i32_0 = arith.constant 0 : i32
    %c0_i32_1 = arith.constant 0 : i32
    return %arg0, %c0_i32, %c0_i32_0 : i32, i32, i32
  }
}

</mosaic_0001>

<llo_original>
// kernel: tpu_custom_call.1
$region0: #{tpu_custom_call.1}
  #allocation0 [shape = 'u32[]', space=smem, size = 0x4, offset = 0x4, fixed_abs, tag = 'smem constant byte address 0x4 - core index']
  #allocation1 [shape = 'u32[144,128]{1,0:T(1,128)}', space=vmem, size = 0x12000, scoped, tag = 'internal scratch']
  #allocation2 [shape = 'f32[1]{0:T(128)S(6)}', space=smem, size = 0x200, scoped, tag = 'scoped memory for tpu_custom_call.1']
  %s0 = inlined_call_operand.vmem [shape: bf16[2,18,72], index: 0, kind: input, shape index: {}]
  %s1 = inlined_call_operand.hbm [shape: bf16[3,72,128], index: 1, kind: input, shape index: {}]
  %s2 = inlined_call_operand.hbm [shape: f32[128,128], index: 2, kind: input, shape index: {}]
  %s3 = inlined_call_operand.vmem [shape: f32[1,128], index: 3, kind: input, shape index: {}]
  %s4 = inlined_call_operand.vmem [shape: f32[1,128], index: 4, kind: input, shape index: {}]
  %s5 = inlined_call_operand.vmem [shape: f32[1,128], index: 5, kind: input, shape index: {}]
  %s6 = inlined_call_operand.vmem [shape: f32[1,128], index: 6, kind: input, shape index: {}]
  %s7 = inlined_call_operand.<no memory space> [shape: f32[1], index: 7, kind: input, shape index: {}]
  %s8 = inlined_call_operand.hbm [shape: f32[2,16,128], index: 8, kind: output, shape index: {}]
  %s9 = sld [smem:[#allocation0]]
  $region73: #{tpu_custom_call.1} parent=0
    _
  %s11 = ssub.s32 1, %s9
  %s12 = scalar_select 0, %s11, %s9
  %13 = sst [smem:[#allocation2]] %s7
  $region1: #{tpu_custom_call.1} parent=0
    #allocation3 [shape = 'u8[55296]{0}', space=vmem, size = 0xd800, scoped, tag = 'input window, operand 1, single buffered']
    #allocation4 [shape = 's32[2]{0}', space=sflag, size = 0x8, scoped, tag = 'scoped memory for tpu_custom_call.1']
    #allocation5 [shape = 's32[2]{0}', space=sflag, size = 0x8, scoped, tag = 'scoped memory for tpu_custom_call.1']
    #allocation6 [shape = 'u8[65536]{0}', space=vmem, size = 0x10000, scoped, tag = 'input window, operand 2, single buffered']
    #allocation7 [shape = 's32[1]{0}', space=sflag, size = 0x4, scoped, tag = 'scoped memory for tpu_custom_call.1']
    #allocation8 [shape = 'u8[16384]{0}', space=vmem, size = 0x4000, scoped, tag = 'output window, operand 0']
    %14 = vsyncpa [#allocation4], 0
    %15 = vsyncpa [#allocation7], 0
    %16 = vsyncpa [#allocation5], 0
    %s17 = scalar_lea.sflag [#allocation5], 1
    %18 = vsyncpa %s17, 0
    loop: start=0, step=1, limit=4
    $region2: #{tpu_custom_call.1} parent=1 // loop_pre_header
      _
    $region3: #{tpu_custom_call.1} parent=1 // loop_header
      %s20 = sphi 0, %s24
      %p21 = scmp.ge.s32.totalorder %s20, 4
      %s30 = sphi 0, %s32
      %s33 = sphi 0, %s30
      %s34 = sphi 0, %s33
      %s50 = sphi 0, %s34
      %s54 = sphi 0, %s54
      %s56 = sphi 0, %s54
      %s57 = sphi 0, %s56
      %s71 = sphi 0, %s57
      %s75 = sphi 0, %s75
      %s77 = sphi 0, %s75
      %s78 = sphi 0, %s77
      %s92 = sphi 0, %s78
      %s96 = sphi 0, %s96
      %s98 = sphi 0, %s96
      %s99 = sphi 0, %s98
      %s113 = sphi 0, %s99
      %s117 = sphi 0, %s117
      %s119 = sphi 0, %s117
      %s120 = sphi 0, %s119
      %s134 = sphi 0, %s120
      %s138 = sphi 0, %s138
      %s140 = sphi 0, %s138
      %s141 = sphi 0, %s140
      %s155 = sphi 0, %s141
      %s159 = sphi 0, %s159
      %s161 = sphi 0, %s159
      %s162 = sphi 0, %s161
      %s176 = sphi 0, %s162
      %s180 = sphi 0, %s180
      %s182 = sphi 0, %s180
      %s183 = sphi 0, %s182
      %s197 = sphi 0, %s183
      %s203 = sphi 0, %s205
      %s206 = sphi 0, %s203
      %s207 = sphi 0, %s206
      %s223 = sphi 0, %s207
    $region4: #{tpu_custom_call.1} parent=1 // loop_header_branch
      %23 = sbr.rel (%p21) target = $region8
    $region5: #{tpu_custom_call.1} parent=1 // loop_body
      %s25 = ssub.s32 %s20, 1
      %s26 = ssub.s32 %s20, 2
      %s27 = sadd.s32 %s20, 1
      %s28 = ssub.s32 %s20, %s27
      %p29 = scmp.eq.s32.totalorder %s28, 0
      %s31 = sadd.s32 %s30, 1
      %s32 = scalar_select %p29, %s30, %s31
      %p35 = pneg %p29
      %p36 = scmp.eq.s32.totalorder %s20, 1
      %p37 = por %p35, %p36
      %p38 = scmp.ne.s32.totalorder %s30, %s33
      %p39 = scmp.eq.s32.totalorder %s20, 0
      %p40 = por %p38, %p39
      %p41 = scmp.ne.s32.totalorder %s30, %s33
      %p42 = scmp.eq.s32.totalorder %s25, 1
      %p43 = por %p41, %p42
      %p44 = scmp.ne.s32.totalorder %s33, %s34
      %p45 = scmp.eq.s32.totalorder %s25, 0
      %p46 = por %p44, %p45
      %p47 = scmp.ne.s32.totalorder %s33, %s34
      %p48 = scmp.eq.s32.totalorder %s26, 1
      %p49 = por %p47, %p48
      %p51 = scmp.ne.s32.totalorder %s34, %s50
      %p52 = scmp.eq.s32.totalorder %s26, 0
      %p53 = por %p51, %p52
      %s55 = sadd.s32 %s54, 1
      %p58 = scmp.eq.s32.totalorder %s20, 1
      %p59 = scmp.ne.s32.totalorder %s54, %s56
      %p60 = scmp.eq.s32.totalorder %s20, 0
      %p61 = por %p59, %p60
      %p62 = scmp.ne.s32.totalorder %s54, %s56
      %p63 = scmp.eq.s32.totalorder %s25, 1
      %p64 = por %p62, %p63
      %p65 = scmp.ne.s32.totalorder %s56, %s57
      %p66 = scmp.eq.s32.totalorder %s25, 0
      %p67 = por %p65, %p66
      %p68 = scmp.ne.s32.totalorder %s56, %s57
      %p69 = scmp.eq.s32.totalorder %s26, 1
      %p70 = por %p68, %p69
      %p72 = scmp.ne.s32.totalorder %s57, %s71
      %p73 = scmp.eq.s32.totalorder %s26, 0
      %p74 = por %p72, %p73
      %s76 = sadd.s32 %s75, 1
      %p79 = scmp.eq.s32.totalorder %s20, 1
      %p80 = scmp.ne.s32.totalorder %s75, %s77
      %p81 = scmp.eq.s32.totalorder %s20, 0
      %p82 = por %p80, %p81
      %p83 = scmp.ne.s32.totalorder %s75, %s77
      %p84 = scmp.eq.s32.totalorder %s25, 1
      %p85 = por %p83, %p84
      %p86 = scmp.ne.s32.totalorder %s77, %s78
      %p87 = scmp.eq.s32.totalorder %s25, 0
      %p88 = por %p86, %p87
      %p89 = scmp.ne.s32.totalorder %s77, %s78
      %p90 = scmp.eq.s32.totalorder %s26, 1
      %p91 = por %p89, %p90
      %p93 = scmp.ne.s32.totalorder %s78, %s92
      %p94 = scmp.eq.s32.totalorder %s26, 0
      %p95 = por %p93, %p94
      %s97 = sadd.s32 %s96, 1
      %p100 = scmp.eq.s32.totalorder %s20, 1
      %p101 = scmp.ne.s32.totalorder %s96, %s98
      %p102 = scmp.eq.s32.totalorder %s20, 0
      %p103 = por %p101, %p102
      %p104 = scmp.ne.s32.totalorder %s96, %s98
      %p105 = scmp.eq.s32.totalorder %s25, 1
      %p106 = por %p104, %p105
      %p107 = scmp.ne.s32.totalorder %s98, %s99
      %p108 = scmp.eq.s32.totalorder %s25, 0
      %p109 = por %p107, %p108
      %p110 = scmp.ne.s32.totalorder %s98, %s99
      %p111 = scmp.eq.s32.totalorder %s26, 1
      %p112 = por %p110, %p111
      %p114 = scmp.ne.s32.totalorder %s99, %s113
      %p115 = scmp.eq.s32.totalorder %s26, 0
      %p116 = por %p114, %p115
      %s118 = sadd.s32 %s117, 1
      %p121 = scmp.eq.s32.totalorder %s20, 1
      %p122 = scmp.ne.s32.totalorder %s117, %s119
      %p123 = scmp.eq.s32.totalorder %s20, 0
      %p124 = por %p122, %p123
      %p125 = scmp.ne.s32.totalorder %s117, %s119
      %p126 = scmp.eq.s32.totalorder %s25, 1
      %p127 = por %p125, %p126
      %p128 = scmp.ne.s32.totalorder %s119, %s120
      %p129 = scmp.eq.s32.totalorder %s25, 0
      %p130 = por %p128, %p129
      %p131 = scmp.ne.s32.totalorder %s119, %s120
      %p132 = scmp.eq.s32.totalorder %s26, 1
      %p133 = por %p131, %p132
      %p135 = scmp.ne.s32.totalorder %s120, %s134
      %p136 = scmp.eq.s32.totalorder %s26, 0
      %p137 = por %p135, %p136
      %s139 = sadd.s32 %s138, 1
      %p142 = scmp.eq.s32.totalorder %s20, 1
      %p143 = scmp.ne.s32.totalorder %s138, %s140
      %p144 = scmp.eq.s32.totalorder %s20, 0
      %p145 = por %p143, %p144
      %p146 = scmp.ne.s32.totalorder %s138, %s140
      %p147 = scmp.eq.s32.totalorder %s25, 1
      %p148 = por %p146, %p147
      %p149 = scmp.ne.s32.totalorder %s140, %s141
      %p150 = scmp.eq.s32.totalorder %s25, 0
      %p151 = por %p149, %p150
      %p152 = scmp.ne.s32.totalorder %s140, %s141
      %p153 = scmp.eq.s32.totalorder %s26, 1
      %p154 = por %p152, %p153
      %p156 = scmp.ne.s32.totalorder %s141, %s155
      %p157 = scmp.eq.s32.totalorder %s26, 0
      %p158 = por %p156, %p157
      %s160 = sadd.s32 %s159, 1
      %p163 = scmp.eq.s32.totalorder %s20, 1
      %p164 = scmp.ne.s32.totalorder %s159, %s161
      %p165 = scmp.eq.s32.totalorder %s20, 0
      %p166 = por %p164, %p165
      %p167 = scmp.ne.s32.totalorder %s159, %s161
      %p168 = scmp.eq.s32.totalorder %s25, 1
      %p169 = por %p167, %p168
      %p170 = scmp.ne.s32.totalorder %s161, %s162
      %p171 = scmp.eq.s32.totalorder %s25, 0
      %p172 = por %p170, %p171
      %p173 = scmp.ne.s32.totalorder %s161, %s162
      %p174 = scmp.eq.s32.totalorder %s26, 1
      %p175 = por %p173, %p174
      %p177 = scmp.ne.s32.totalorder %s162, %s176
      %p178 = scmp.eq.s32.totalorder %s26, 0
      %p179 = por %p177, %p178
      %s181 = sadd.s32 %s180, 1
      %p184 = scmp.eq.s32.totalorder %s20, 1
      %p185 = scmp.ne.s32.totalorder %s180, %s182
      %p186 = scmp.eq.s32.totalorder %s20, 0
      %p187 = por %p185, %p186
      %p188 = scmp.ne.s32.totalorder %s180, %s182
      %p189 = scmp.eq.s32.totalorder %s25, 1
      %p190 = por %p188, %p189
      %p191 = scmp.ne.s32.totalorder %s182, %s183
      %p192 = scmp.eq.s32.totalorder %s25, 0
      %p193 = por %p191, %p192
      %p194 = scmp.ne.s32.totalorder %s182, %s183
      %p195 = scmp.eq.s32.totalorder %s26, 1
      %p196 = por %p194, %p195
      %p198 = scmp.ne.s32.totalorder %s183, %s197
      %p199 = scmp.eq.s32.totalorder %s26, 0
      %p200 = por %p198, %p199
      %s201 = ssub.s32 %s20, %s27
      %p202 = scmp.eq.s32.totalorder %s201, 0
      %s204 = sadd.s32 %s203, 1
      %s205 = scalar_select %p202, %s203, %s204
      %p208 = pneg %p202
      %p209 = scmp.eq.s32.totalorder %s20, 1
      %p210 = por %p208, %p209
      %p211 = scmp.ne.s32.totalorder %s203, %s206
      %p212 = scmp.eq.s32.totalorder %s20, 0
      %p213 = por %p211, %p212
      %p214 = scmp.ne.s32.totalorder %s203, %s206
      %p215 = scmp.eq.s32.totalorder %s25, 1
      %p216 = por %p214, %p215
      %p217 = scmp.ne.s32.totalorder %s206, %s207
      %p218 = scmp.eq.s32.totalorder %s25, 0
      %p219 = por %p217, %p218
      %p220 = scmp.ne.s32.totalorder %s206, %s207
      %p221 = scmp.eq.s32.totalorder %s26, 1
      %p222 = por %p220, %p221
      %p224 = scmp.ne.s32.totalorder %s207, %s223
      %p225 = scmp.eq.s32.totalorder %s26, 0
      %p226 = por %p224, %p225
      %p227 = scmp.le.s32.totalorder 1, %s20
      %p228 = scmp.lt.s32.totalorder %s20, 3
      %p229 = pnand %p227, %p228
      %p230 = pneg %p229
      // Predicated region
      $region9: #{tpu_custom_call.1} parent=5 // pred_check
        _
      $region10: #{tpu_custom_call.1} parent=5 // pred_check_branch
        %232 = sbr.rel (%p229) target = $region12
      $region11: #{tpu_custom_call.1} parent=5 // pred_region
        %s233 = ssub.s32 %s20, 1
        // Predicated region
        $region13: #{tpu_custom_call.1} parent=11 // pred_check
          %p234 = pneg %p67
        $region14: #{tpu_custom_call.1} parent=11 // pred_check_branch
          %236 = sbr.rel (%p234) target = $region16
        $region15: #{tpu_custom_call.1} parent=11 // pred_region
          %s238 = ssub.s32 1728, 1728
          %239 = vsyncadd [#allocation4], %s238
          %s240 = sshll.u32 [#allocation3], 4
          %s241 = int_to_ptr.vmem [resolvable:$true] %s240
          %246 = dma.hbm_to_vmem [thread:$0]  %s1, 1728, %s241, [#allocation4], 64, 64, 4
        $region16: #{tpu_custom_call.1} parent=11 // pred_fallthru
          _
        // Predicated region
        $region17: #{tpu_custom_call.1} parent=11 // pred_check
          %p247 = pneg %p88
        $region18: #{tpu_custom_call.1} parent=11 // pred_check_branch
          %249 = sbr.rel (%p247) target = $region20
        $region19: #{tpu_custom_call.1} parent=11 // pred_region
          %s251 = ssub.s32 2048, 2048
          %252 = vsyncadd [#allocation7], %s251
          %s253 = sshll.u32 [#allocation6], 4
          %s254 = int_to_ptr.vmem [resolvable:$true] %s253
          %259 = dma.hbm_to_vmem [thread:$0]  %s2, 2048, %s254, [#allocation7], 128, 128, 8
        $region20: #{tpu_custom_call.1} parent=11 // pred_fallthru
          _
        // Predicated region
        $region21: #{tpu_custom_call.1} parent=11 // pred_check
          %p260 = pneg %p109
        $region22: #{tpu_custom_call.1} parent=11 // pred_check_branch
          %262 = sbr.rel (%p260) target = $region24
        $region23: #{tpu_custom_call.1} parent=11 // pred_region
          _
        $region24: #{tpu_custom_call.1} parent=11 // pred_fallthru
          _
        // Predicated region
        $region25: #{tpu_custom_call.1} parent=11 // pred_check
          %p263 = pneg %p130
        $region26: #{tpu_custom_call.1} parent=11 // pred_check_branch
          %265 = sbr.rel (%p263) target = $region28
        $region27: #{tpu_custom_call.1} parent=11 // pred_region
          _
        $region28: #{tpu_custom_call.1} parent=11 // pred_fallthru
          _
        // Predicated region
        $region29: #{tpu_custom_call.1} parent=11 // pred_check
          %p266 = pneg %p151
        $region30: #{tpu_custom_call.1} parent=11 // pred_check_branch
          %268 = sbr.rel (%p266) target = $region32
        $region31: #{tpu_custom_call.1} parent=11 // pred_region
          _
        $region32: #{tpu_custom_call.1} parent=11 // pred_fallthru
          _
        // Predicated region
        $region33: #{tpu_custom_call.1} parent=11 // pred_check
          %p269 = pneg %p172
        $region34: #{tpu_custom_call.1} parent=11 // pred_check_branch
          %271 = sbr.rel (%p269) target = $region36
        $region35: #{tpu_custom_call.1} parent=11 // pred_region
          _
        $region36: #{tpu_custom_call.1} parent=11 // pred_fallthru
          _
        // Predicated region
        $region37: #{tpu_custom_call.1} parent=11 // pred_check
          %p272 = pneg %p193
        $region38: #{tpu_custom_call.1} parent=11 // pred_check_branch
          %274 = sbr.rel (%p272) target = $region40
        $region39: #{tpu_custom_call.1} parent=11 // pred_region
          _
        $region40: #{tpu_custom_call.1} parent=11 // pred_fallthru
          _
      $region12: #{tpu_custom_call.1} parent=5 // pred_fallthru
        _
      %p275 = scmp.lt.s32.totalorder %s20, 2
      // Predicated region
      $region41: #{tpu_custom_call.1} parent=5 // pred_check
        %p276 = pneg %p275
      $region42: #{tpu_custom_call.1} parent=5 // pred_check_branch
        %278 = sbr.rel (%p276) target = $region44
      $region43: #{tpu_custom_call.1} parent=5 // pred_region
        // Predicated region
        $region45: #{tpu_custom_call.1} parent=43 // pred_check
          %p279 = pneg %p40
        $region46: #{tpu_custom_call.1} parent=43 // pred_check_branch
          %281 = sbr.rel (%p279) target = $region48
        $region47: #{tpu_custom_call.1} parent=43 // pred_region
          %p282 = scmp.lt.s32.totalorder %s20, 1
          %s283 = scalar_select %p282, %s20, 1
          %s284 = smul.addr %s283, 3
          %s285 = smul.addr %s284, 4
          %s286 = scalar_lea.vmem %s0, %s285
        $region48: #{tpu_custom_call.1} parent=43 // pred_fallthru
          _
      $region44: #{tpu_custom_call.1} parent=5 // pred_fallthru
        _
      %p287 = scmp.le.s32.totalorder 1, %s20
      %p288 = scmp.lt.s32.totalorder %s20, 3
      %p289 = pnand %p287, %p288
      %p290 = pneg %p289
      // Predicated region
      $region49: #{tpu_custom_call.1} parent=5 // pred_check
        _
      $region50: #{tpu_custom_call.1} parent=5 // pred_check_branch
        %292 = sbr.rel (%p289) target = $region52
      $region51: #{tpu_custom_call.1} parent=5 // pred_region
        %s293 = ssub.s32 %s20, 1
        // Predicated region
        $region53: #{tpu_custom_call.1} parent=51 // pred_check
          %p294 = pneg %p67
        $region54: #{tpu_custom_call.1} parent=51 // pred_check_branch
          %296 = sbr.rel (%p294) target = $region56
        $region55: #{tpu_custom_call.1} parent=51 // pred_region
          %297 = dma.done [#allocation4], 1728
        $region56: #{tpu_custom_call.1} parent=51 // pred_fallthru
          _
        // Predicated region
        $region57: #{tpu_custom_call.1} parent=51 // pred_check
          %p298 = pneg %p88
        $region58: #{tpu_custom_call.1} parent=51 // pred_check_branch
          %300 = sbr.rel (%p298) target = $region60
        $region59: #{tpu_custom_call.1} parent=51 // pred_region
          %301 = dma.done [#allocation7], 2048
        $region60: #{tpu_custom_call.1} parent=51 // pred_fallthru
          _
        %p302 = scmp.lt.s32.totalorder %s25, 1
        %s303 = scalar_select %p302, %s25, 1
        %s304 = smul.addr %s303, 3
        %s305 = smul.addr %s304, 4
        %s306 = scalar_lea.vmem %s0, %s305
        %p307 = pneg %p46
        %p308 = pneg %p43
        %p309 = pneg %p67
        %p310 = pneg %p64
        %p311 = pneg %p88
        %p312 = pneg %p85
        %p313 = pneg %p109
        %p314 = pneg %p106
        %p315 = pneg %p130
        %p316 = pneg %p127
        %p317 = pneg %p151
        %p318 = pneg %p148
        %p319 = pneg %p172
        %p320 = pneg %p169
        %p321 = pneg %p193
        %p322 = pneg %p190
        %p323 = pneg %p219
        %p324 = pneg %p216
        %s325 = sand.u32 %s206, 1
        %s326 = scalar_lea.sflag [#allocation5], %s325
        %s327 = sand.u32 %s206, 1
        %s328 = smul.addr %s327, 16
        %s329 = scalar_lea.vmem [#allocation8], %s328
        %p330 = scmp.lt.s32.totalorder %s25, 1
        %s331 = scalar_select %p330, %s25, 1
        %s332 = smul.addr %s331, 3
        %s333 = smul.addr %s332, 4
        %s334 = scalar_lea.vmem %s0, %s333
        %v336 = vld [vmem:[%s334] sm:$0xf]
        %v337 = vld [vmem:[%s334 + $0x4] sm:$0xf]
        %v338 = vld [vmem:[%s334 + $0x8] sm:$0x1]
        %v339 = vld [vmem:[#allocation3] sm:$0xf]
        %v340 = vld [vmem:[#allocation3 + $0x4] sm:$0xf]
        %v341 = vld [vmem:[#allocation3 + $0x8] sm:$0xf]
        %v342 = vld [vmem:[#allocation3 + $0xc] sm:$0xf]
        %v343 = vld [vmem:[#allocation3 + $0x10] sm:$0xf]
        %v344 = vld [vmem:[#allocation3 + $0x14] sm:$0xf]
        %v345 = vld [vmem:[#allocation3 + $0x18] sm:$0xf]
        %v346 = vld [vmem:[#allocation3 + $0x1c] sm:$0xf]
        %v347 = vld [vmem:[#allocation3 + $0x20] sm:$0xf]
        %s348 = scalar_lea.vmem [#allocation3], 36
        %v349 = vld [vmem:[%s348] sm:$0xf]
        %v350 = vld [vmem:[%s348 + $0x4] sm:$0xf]
        %v351 = vld [vmem:[%s348 + $0x8] sm:$0xf]
        %v352 = vld [vmem:[%s348 + $0xc] sm:$0xf]
        %v353 = vld [vmem:[%s348 + $0x10] sm:$0xf]
        %v354 = vld [vmem:[%s348 + $0x14] sm:$0xf]
        %v355 = vld [vmem:[%s348 + $0x18] sm:$0xf]
        %v356 = vld [vmem:[%s348 + $0x1c] sm:$0xf]
        %v357 = vld [vmem:[%s348 + $0x20] sm:$0xf]
        %v361 = vunpack.c.l.b16 %v336
        %v362 = vunpack.c.l.b16 %v337
        %v363 = vunpack.c.l.b16 %v338
        %v364 = vpack.c.b16 %v362, %v361
        %v365 = vpack.c.b16 %v363, %v363
        %vm366 = vsmask.f32 7424
        %v368 = vshrl.u32 %v364, 16
        %v370 = vshll.u32 %v364, 16
        %v372 = vrot.slane %v370, 1
        %v373 = vor.u32 %v368, %v372
        %v375 = vshll.u32 %v365, 16
        %v377 = vrot.slane %v375, 1
        %v378 = vsel %vm366, %v373, %v377
        %v388 = vunpack.c.l.b16 %v349
        %v389 = vunpack.c.l.b16 %v350
        %v390 = vunpack.c.l.b16 %v351
        %v391 = vunpack.c.l.b16 %v352
        %v392 = vunpack.c.l.b16 %v353
        %v393 = vunpack.c.l.b16 %v354
        %v394 = vunpack.c.l.b16 %v355
        %v395 = vunpack.c.l.b16 %v356
        %v396 = vunpack.c.l.b16 %v357
        %v397 = vpack.c.b16 %v389, %v388
        %v398 = vpack.c.b16 %v391, %v390
        %v399 = vpack.c.b16 %v393, %v392
        %v400 = vpack.c.b16 %v395, %v394
        %v401 = vpack.c.b16 %v396, %v396
        %vm406 = vcmask 588800
        %v408 = vsel %vm406, %v378, 0
        %vm410 = vcmask 1043456
        %v412 = vsel %vm410, %v401, 0
        %414 = vmatprep.subr.bf16.mxu0 0
        %415 = vmatpush1.bf16.msra.mxu0 %v397
        %416 = vmatprep.subr.bf16.mxu0 0
        %417 = vmatpush1.bf16.msra.mxu0 %v398
        %418 = vmatprep.subr.bf16.mxu0 0
        %419 = vmatpush1.bf16.msra.mxu0 %v399
        %420 = vmatprep.subr.bf16.mxu0 0
        %421 = vmatpush1.bf16.msra.mxu0 %v400
        %422 = vmatprep.subr.bf16.mxu0 0
        %423 = vmatpush1.bf16.msra.mxu0 %v412
        %424 = vmatprep.subr.bf16.mxu0 0
        %425 = vmatpush1.bf16.msra.mxu0 0
        %426 = vmatprep.subr.bf16.mxu0 0
        %427 = vmatpush1.bf16.msra.mxu0 0
        %428 = vmatprep.subr.bf16.mxu0 0
        %429 = vmatpush1.bf16.msra.mxu0 0
        %430 = vmatprep.subr.bf16.mxu0 0
        %431 = vmatpush1.bf16.msra.mxu0 0
        %432 = vmatprep.subr.bf16.mxu0 0
        %433 = vmatpush1.bf16.msra.mxu0 0
        %434 = vmatprep.subr.bf16.mxu0 0
        %435 = vmatpush1.bf16.msra.mxu0 0
        %436 = vmatprep.subr.bf16.mxu0 0
        %437 = vmatpush1.bf16.msra.mxu0 0
        %438 = vmatprep.subr.bf16.mxu0 0
        %439 = vmatpush1.bf16.msra.mxu0 0
        %440 = vmatprep.subr.bf16.mxu0 0
        %441 = vmatpush1.bf16.msra.mxu0 0
        %442 = vmatprep.subr.bf16.mxu0 0
        %443 = vmatpush1.bf16.msra.mxu0 0
        %444 = vmatprep.subr.bf16.mxu0 0
        %445 = vmatpush1.bf16.msra.mxu0 0
        %446 = vmatprep.mubr.bf16.mxu0 0
        %447 = vmatmul.mubr.bf16.gmra.mrb[0].mxu0 %v408
        %v448 = vpop.f32.mrb[0].mxu0
        %v449 = vadd.f32 0.0, %v448
        %v450 = vpop.f32.mrb[0].mxu0
        %v451 = vpop.f32.mrb[0].mxu0
        %v452 = vadd.f32 0.0, %v451
        %v453 = vpop.f32.mrb[0].mxu0
        %454 = vdwg.mxu0
        %v464 = vunpack.c.l.b16 %v339
        %v465 = vunpack.c.l.b16 %v340
        %v466 = vunpack.c.l.b16 %v341
        %v467 = vunpack.c.l.b16 %v342
        %v468 = vunpack.c.l.b16 %v343
        %v469 = vunpack.c.l.b16 %v344
        %v470 = vunpack.c.l.b16 %v345
        %v471 = vunpack.c.l.b16 %v346
        %v472 = vunpack.c.l.b16 %v347
        %v473 = vpack.c.b16 %v465, %v464
        %v474 = vpack.c.b16 %v467, %v466
        %v475 = vpack.c.b16 %v469, %v468
        %v476 = vpack.c.b16 %v471, %v470
        %v477 = vpack.c.b16 %v472, %v472
        %v482 = vsel %vm406, %v364, 0
        %v485 = vsel %vm410, %v477, 0
        %487 = vmatprep.subr.bf16.mxu0 0
        %488 = vmatpush1.bf16.msra.mxu0 %v473
        %489 = vmatprep.subr.bf16.mxu0 0
        %490 = vmatpush1.bf16.msra.mxu0 %v474
        %491 = vmatprep.subr.bf16.mxu0 0
        %492 = vmatpush1.bf16.msra.mxu0 %v475
        %493 = vmatprep.subr.bf16.mxu0 0
        %494 = vmatpush1.bf16.msra.mxu0 %v476
        %495 = vmatprep.subr.bf16.mxu0 0
        %496 = vmatpush1.bf16.msra.mxu0 %v485
        %497 = vmatprep.subr.bf16.mxu0 0
        %498 = vmatpush1.bf16.msra.mxu0 0
        %499 = vmatprep.subr.bf16.mxu0 0
        %500 = vmatpush1.bf16.msra.mxu0 0
        %501 = vmatprep.subr.bf16.mxu0 0
        %502 = vmatpush1.bf16.msra.mxu0 0
        %503 = vmatprep.subr.bf16.mxu0 0
        %504 = vmatpush1.bf16.msra.mxu0 0
        %505 = vmatprep.subr.bf16.mxu0 0
        %506 = vmatpush1.bf16.msra.mxu0 0
        %507 = vmatprep.subr.bf16.mxu0 0
        %508 = vmatpush1.bf16.msra.mxu0 0
        %509 = vmatprep.subr.bf16.mxu0 0
        %510 = vmatpush1.bf16.msra.mxu0 0
        %511 = vmatprep.subr.bf16.mxu0 0
        %512 = vmatpush1.bf16.msra.mxu0 0
        %513 = vmatprep.subr.bf16.mxu0 0
        %514 = vmatpush1.bf16.msra.mxu0 0
        %515 = vmatprep.subr.bf16.mxu0 0
        %516 = vmatpush1.bf16.msra.mxu0 0
        %517 = vmatprep.subr.bf16.mxu0 0
        %518 = vmatpush1.bf16.msra.mxu0 0
        %519 = vmatprep.mubr.bf16.mxu0 0
        %520 = vmatmul.mubr.bf16.gmra.mrb[0].mxu0 %v482
        %v521 = vpop.f32.mrb[0].mxu0
        %v522 = vadd.f32 %v449, %v521
        %v523 = vpop.f32.mrb[0].mxu0
        %v524 = vpop.f32.mrb[0].mxu0
        %v525 = vadd.f32 %v452, %v524
        %v526 = vpop.f32.mrb[0].mxu0
        %527 = vdwg.mxu0
        %s528 = scalar_lea.vmem [#allocation3], 72
        %v529 = vld [vmem:[%s528] sm:$0xf]
        %v530 = vld [vmem:[%s528 + $0x4] sm:$0xf]
        %v531 = vld [vmem:[%s528 + $0x8] sm:$0xf]
        %v532 = vld [vmem:[%s528 + $0xc] sm:$0xf]
        %v533 = vld [vmem:[%s528 + $0x10] sm:$0xf]
        %v534 = vld [vmem:[%s528 + $0x14] sm:$0xf]
        %v535 = vld [vmem:[%s528 + $0x18] sm:$0xf]
        %v536 = vld [vmem:[%s528 + $0x1c] sm:$0xf]
        %v537 = vld [vmem:[%s528 + $0x20] sm:$0xf]
        %vm538 = vcmask 1046528
        %v539 = vrot.slane %v364, 1
        %v540 = vrot.slane %v365, 1
        %v541 = vsel %vm538, %v539, %v540
        %v551 = vunpack.c.l.b16 %v529
        %v552 = vunpack.c.l.b16 %v530
        %v553 = vunpack.c.l.b16 %v531
        %v554 = vunpack.c.l.b16 %v532
        %v555 = vunpack.c.l.b16 %v533
        %v556 = vunpack.c.l.b16 %v534
        %v557 = vunpack.c.l.b16 %v535
        %v558 = vunpack.c.l.b16 %v536
        %v559 = vunpack.c.l.b16 %v537
        %v560 = vpack.c.b16 %v552, %v551
        %v561 = vpack.c.b16 %v554, %v553
        %v562 = vpack.c.b16 %v556, %v555
        %v563 = vpack.c.b16 %v558, %v557
        %v564 = vpack.c.b16 %v559, %v559
        %v570 = vsel %vm406, %v541, 0
        %v573 = vsel %vm410, %v564, 0
        %575 = vmatprep.subr.bf16.mxu0 0
        %576 = vmatpush1.bf16.msra.mxu0 %v560
        %577 = vmatprep.subr.bf16.mxu0 0
        %578 = vmatpush1.bf16.msra.mxu0 %v561
        %579 = vmatprep.subr.bf16.mxu0 0
        %580 = vmatpush1.bf16.msra.mxu0 %v562
        %581 = vmatprep.subr.bf16.mxu0 0
        %582 = vmatpush1.bf16.msra.mxu0 %v563
        %583 = vmatprep.subr.bf16.mxu0 0
        %584 = vmatpush1.bf16.msra.mxu0 %v573
        %585 = vmatprep.subr.bf16.mxu0 0
        %586 = vmatpush1.bf16.msra.mxu0 0
        %587 = vmatprep.subr.bf16.mxu0 0
        %588 = vmatpush1.bf16.msra.mxu0 0
        %589 = vmatprep.subr.bf16.mxu0 0
        %590 = vmatpush1.bf16.msra.mxu0 0
        %591 = vmatprep.subr.bf16.mxu0 0
        %592 = vmatpush1.bf16.msra.mxu0 0
        %593 = vmatprep.subr.bf16.mxu0 0
        %594 = vmatpush1.bf16.msra.mxu0 0
        %595 = vmatprep.subr.bf16.mxu0 0
        %596 = vmatpush1.bf16.msra.mxu0 0
        %597 = vmatprep.subr.bf16.mxu0 0
        %598 = vmatpush1.bf16.msra.mxu0 0
        %599 = vmatprep.subr.bf16.mxu0 0
        %600 = vmatpush1.bf16.msra.mxu0 0
        %601 = vmatprep.subr.bf16.mxu0 0
        %602 = vmatpush1.bf16.msra.mxu0 0
        %603 = vmatprep.subr.bf16.mxu0 0
        %604 = vmatpush1.bf16.msra.mxu0 0
        %605 = vmatprep.subr.bf16.mxu0 0
        %606 = vmatpush1.bf16.msra.mxu0 0
        %607 = vmatprep.mubr.bf16.mxu0 0
        %608 = vmatmul.mubr.bf16.gmra.mrb[0].mxu0 %v570
        %v609 = vpop.f32.mrb[0].mxu0
        %v610 = vadd.f32 0.0, %v609
        %v611 = vpop.f32.mrb[0].mxu0
        %v612 = vpop.f32.mrb[0].mxu0
        %v613 = vadd.f32 0.0, %v612
        %v614 = vpop.f32.mrb[0].mxu0
        %615 = vdwg.mxu0
        %v616 = vadd.f32 %v522, %v610
        %v617 = vadd.f32 %v525, %v613
        %v618 = vld [vmem:[%s3] sm:$0x1]
        %v620 = vlaneseq
        %v621 = vshrl.u32 %v620, 7
        %v622 = vsub.s32 0, %v621
        %v623 = vrot.slane %v618, %v622
        %v625 = vadd.f32 %v616, %v623
        %v626 = vadd.f32 %v617, %v623
        %v627 = vmul.f32 %v625, %v625
        %v628 = vmul.f32 %v626, %v626
        %v629 = vadd.f32 %v627, %v628
        %v630 = vrot.slane %v629, 4
        %v631 = vadd.f32 %v629, %v630
        %v632 = vrot.slane %v631, 2
        %v633 = vadd.f32 %v631, %v632
        %v634 = vrot.slane %v633, 1
        %v635 = vadd.f32 %v633, %v634
        %v636 = vld [vmem:[#allocation6] sm:$0xff]
        %v637 = vld [vmem:[#allocation6 + $0x8] sm:$0xff]
        %v638 = vld [vmem:[#allocation6 + $0x10] sm:$0xff]
        %v639 = vld [vmem:[#allocation6 + $0x18] sm:$0xff]
        %v640 = vld [vmem:[#allocation6 + $0x20] sm:$0xff]
        %v641 = vld [vmem:[#allocation6 + $0x28] sm:$0xff]
        %v642 = vld [vmem:[#allocation6 + $0x30] sm:$0xff]
        %v643 = vld [vmem:[#allocation6 + $0x38] sm:$0xff]
        %v644 = vld [vmem:[#allocation6 + $0x40] sm:$0xff]
        %v645 = vld [vmem:[#allocation6 + $0x48] sm:$0xff]
        %v646 = vld [vmem:[#allocation6 + $0x50] sm:$0xff]
        %v647 = vld [vmem:[#allocation6 + $0x58] sm:$0xff]
        %v648 = vld [vmem:[#allocation6 + $0x60] sm:$0xff]
        %v649 = vld [vmem:[#allocation6 + $0x68] sm:$0xff]
        %v650 = vld [vmem:[#allocation6 + $0x70] sm:$0xff]
        %v651 = vld [vmem:[#allocation6 + $0x78] sm:$0xff]
        %s652 = sld [smem:[#allocation2]]
        %s653 = sand.u32 2147483647, %s652
        %v654 = vstv %s653
        %655 = vmatprep.subr.mxu0 0.0
        %656 = vmatpush1.msra.mxu0 %v636
        %657 = vmatprep.subr.mxu0 0.0
        %658 = vmatpush1.msra.mxu0 %v637
        %659 = vmatprep.subr.mxu0 0.0
        %660 = vmatpush1.msra.mxu0 %v638
        %661 = vmatprep.subr.mxu0 0.0
        %662 = vmatpush1.msra.mxu0 %v639
        %663 = vmatprep.subr.mxu0 0.0
        %664 = vmatpush1.msra.mxu0 %v640
        %665 = vmatprep.subr.mxu0 0.0
        %666 = vmatpush1.msra.mxu0 %v641
        %667 = vmatprep.subr.mxu0 0.0
        %668 = vmatpush1.msra.mxu0 %v642
        %669 = vmatprep.subr.mxu0 0.0
        %670 = vmatpush1.msra.mxu0 %v643
        %671 = vmatprep.subr.mxu0 0.0
        %672 = vmatpush1.msra.mxu0 %v644
        %673 = vmatprep.subr.mxu0 0.0
        %674 = vmatpush1.msra.mxu0 %v645
        %675 = vmatprep.subr.mxu0 0.0
        %676 = vmatpush1.msra.mxu0 %v646
        %677 = vmatprep.subr.mxu0 0.0
        %678 = vmatpush1.msra.mxu0 %v647
        %679 = vmatprep.subr.mxu0 0.0
        %680 = vmatpush1.msra.mxu0 %v648
        %681 = vmatprep.subr.mxu0 0.0
        %682 = vmatpush1.msra.mxu0 %v649
        %683 = vmatprep.subr.mxu0 0.0
        %684 = vmatpush1.msra.mxu0 %v650
        %685 = vmatprep.subr.mxu0 0.0
        %686 = vmatpush1.msra.mxu0 %v651
        %687 = vmatprep.subr.mxu0 0.0
        %688 = vmatpush1.msra.mxu0 0.0
        %689 = vmatprep.subr.mxu0 0.0
        %690 = vmatpush1.msra.mxu0 0.0
        %691 = vmatprep.subr.mxu0 0.0
        %692 = vmatpush1.msra.mxu0 0.0
        %693 = vmatprep.subr.mxu0 0.0
        %694 = vmatpush1.msra.mxu0 0.0
        %695 = vmatprep.subr.mxu0 0.0
        %696 = vmatpush1.msra.mxu0 0.0
        %697 = vmatprep.subr.mxu0 0.0
        %698 = vmatpush1.msra.mxu0 0.0
        %699 = vmatprep.subr.mxu0 0.0
        %700 = vmatpush1.msra.mxu0 0.0
        %701 = vmatprep.subr.mxu0 0.0
        %702 = vmatpush1.msra.mxu0 0.0
        %703 = vmatprep.subr.mxu0 0.0
        %704 = vmatpush1.msra.mxu0 0.0
        %705 = vmatprep.subr.mxu0 0.0
        %706 = vmatpush1.msra.mxu0 0.0
        %707 = vmatprep.subr.mxu0 0.0
        %708 = vmatpush1.msra.mxu0 0.0
        %709 = vmatprep.subr.mxu0 0.0
        %710 = vmatpush1.msra.mxu0 0.0
        %711 = vmatprep.subr.mxu0 0.0
        %712 = vmatpush1.msra.mxu0 0.0
        %713 = vmatprep.subr.mxu0 0.0
        %714 = vmatpush1.msra.mxu0 0.0
        %715 = vmatprep.subr.mxu0 0.0
        %716 = vmatpush1.msra.mxu0 0.0
        %717 = vmatprep.subr.mxu0 0.0
        %718 = vmatpush1.msra.mxu0 0.0
        %719 = vmatprep.mubr.f32.mxu0 0.0
        %720 = vmatmul.mubr.f32.gmra.mrb[0].mxu0 %v635
        %v721 = vpop.f32.mrb[0].mxu0
        %v722 = vadd.f32 %v654, %v721
        %v723 = vpop.f32.mrb[0].mxu0
        %724 = vdwg.mxu0
        %v725 = vrsqrt.pop %v722
        %v726 = vlaneseq
        %v727 = vshrl.u32 %v726, 7
        %v728 = vsub.s32 0, %v727
        %v729 = vrot.slane %v725, %v728
        %v730 = vmul.f32 %v625, %v729
        %v731 = vmul.f32 %v626, %v729
        %v732 = vld [vmem:[%s4] sm:$0x1]
        %v734 = vlaneseq
        %v735 = vshrl.u32 %v734, 7
        %v736 = vsub.s32 0, %v735
        %v737 = vrot.slane %v732, %v736
        %v739 = vmul.f32 %v737, %v730
        %v740 = vmul.f32 %v737, %v731
        %v741 = vld [vmem:[%s5] sm:$0x1]
        %v743 = vlaneseq
        %v744 = vshrl.u32 %v743, 7
        %v745 = vsub.s32 0, %v744
        %v746 = vrot.slane %v741, %v745
        %v748 = vadd.f32 %v739, %v746
        %v749 = vadd.f32 %v740, %v746
        %v750 = vld [vmem:[%s6] sm:$0x1]
        %v752 = vlaneseq
        %v753 = vshrl.u32 %v752, 7
        %v754 = vsub.s32 0, %v753
        %v755 = vrot.slane %v750, %v754
        %v757 = vmax.f32 %v748, %v755
        %v758 = vmax.f32 %v749, %v755
        %759 = vst [vmem:[%s329] sm:$0xff] %v757
        %760 = vst [vmem:[%s329 + $0x8] sm:$0xff] %v758
        %s761 = sand.u32 %s206, 1
        %s762 = scalar_lea.sflag [#allocation5], %s761
        %s763 = sand.u32 %s206, 1
        %s764 = smul.addr %s763, 16
        %s765 = scalar_lea.vmem [#allocation8], %s764
        // Predicated region
        $region61: #{tpu_custom_call.1} parent=51 // pred_check
          %p766 = pneg %p216
        $region62: #{tpu_custom_call.1} parent=51 // pred_check_branch
          %768 = sbr.rel (%p766) target = $region64
        $region63: #{tpu_custom_call.1} parent=51 // pred_region
          %s770 = ssub.s32 256, 256
          %771 = vsyncadd %s762, %s770
          %s772 = smul.addr %s25, 2
          %s773 = smul.addr %s772, 128
          %s774 = scalar_lea.hbm %s8, %s773
          %s775 = sshll.u32 %s765, 4
          %s776 = int_to_ptr.vmem [resolvable:$true] %s775
          %781 = dma.vmem_to_hbm [thread:$0]  %s776, 256, %s774, %s762, 128, 128, 8
        $region64: #{tpu_custom_call.1} parent=51 // pred_fallthru
          _
      $region52: #{tpu_custom_call.1} parent=5 // pred_fallthru
        _
      %p782 = scmp.le.s32.totalorder 2, %s20
      // Predicated region
      $region65: #{tpu_custom_call.1} parent=5 // pred_check
        %p783 = pneg %p782
      $region66: #{tpu_custom_call.1} parent=5 // pred_check_branch
        %785 = sbr.rel (%p783) target = $region68
      $region67: #{tpu_custom_call.1} parent=5 // pred_region
        %s786 = ssub.s32 %s20, 2
        // Predicated region
        $region69: #{tpu_custom_call.1} parent=67 // pred_check
          %p787 = pneg %p222
        $region70: #{tpu_custom_call.1} parent=67 // pred_check_branch
          %789 = sbr.rel (%p787) target = $region72
        $region71: #{tpu_custom_call.1} parent=67 // pred_region
          %s790 = sand.u32 %s207, 1
          %s791 = scalar_lea.sflag [#allocation5], %s790
          %s792 = sand.u32 %s207, 1
          %s793 = smul.addr %s792, 16
          %s794 = scalar_lea.vmem [#allocation8], %s793
          %795 = dma.done %s791, 256
        $region72: #{tpu_custom_call.1} parent=67 // pred_fallthru
          _
      $region68: #{tpu_custom_call.1} parent=5 // pred_fallthru
        _
    $region6: #{tpu_custom_call.1} parent=1 // loop_footer
      %s24 = sadd.s32 1, %s20
    $region7: #{tpu_custom_call.1} parent=1 // loop_footer_branch
      %19 = sbr.rel target = $region3
    $region8: #{tpu_custom_call.1} parent=1 // loop_exit
      _
    %796 = vsyncpa [#allocation4], 1
    %s797 = scalar_lea.sflag [#allocation4], 1
    %798 = vsyncpa %s797, 1
    %799 = vsyncpa [#allocation7], 1
    %800 = vsyncpa [#allocation5], 1
    %s801 = scalar_lea.sflag [#allocation5], 1
    %802 = vsyncpa %s801, 1

</llo_original>
